<compile_context>
chip_gen: v6e
topology: v6e:2x2x1
jax: 0.10.0
libtpu: 0.0.40
codegen_flags: <defaults>
</compile_context>

<pallas_src>
import math
import jax
import jax.numpy as jnp
from jax.experimental import pallas as pl
from jax.experimental.pallas import tpu as pltpu

# ---------------- model hyper-parameters (small, consistent with the module) --------
VOCAB = 19 + 3          # 22 tokens
D_MODEL = 32
N_HEAD = 4              # head_dim = 8
HIDDEN = 64             # feed-forward hidden dim
LN_EPS = 1e-5
B = 2                   # batch
S = 8                   # sequence length
NB = 2 * B              # stacked L/R sequences

# ------------- single-parameter-slab layout (rows; lane width = 128) ----------------
ROW_WQKV = 0                                # (E, 3E) fused [wq|wk|wv]
ROW_WO = ROW_WQKV + D_MODEL                 # (E, E)
ROW_W1 = ROW_WO + D_MODEL                   # (E, HID)
ROW_W2 = ROW_W1 + D_MODEL                   # (HID, E)
ROW_SEG = ROW_W2 + HIDDEN                   # (E, H)  per-head score reducer (scale folded in)
ROW_EXP = ROW_SEG + D_MODEL                 # (H, E)  per-head prob expander
ROW_VEC = -(-(ROW_EXP + N_HEAD) // 8) * 8   # vector block, one row each
V_BQKV, V_BO, V_BF1, V_BF2, V_G1, V_BE1, V_G2, V_BE2, V_WP, V_BP = range(10)
P_ROWS = -(-(ROW_VEC + 10) // 8) * 8        # 216
P_COLS = 128


# ---------------------------------- Pallas kernel ------------------------------------
def attn_model_kernel(d_ref, p_ref, out_ref):
    E, H, SEQ, HID = D_MODEL, N_HEAD, S, HIDDEN

    # ---- unpack parameters from the single slab (static, aligned slices) ----
    wqkv = p_ref[ROW_WQKV:ROW_WQKV + E, 0:3 * E]
    wo = p_ref[ROW_WO:ROW_WO + E, 0:E]
    w1 = p_ref[ROW_W1:ROW_W1 + E, 0:HID]
    w2 = p_ref[ROW_W2:ROW_W2 + HID, 0:E]
    seg = p_ref[ROW_SEG:ROW_SEG + E, 0:H]         # (E, H)
    expd = p_ref[ROW_EXP:ROW_EXP + H, 0:E]        # (H, E)

    def vrow(idx, width):
        r = ROW_VEC + idx
        return p_ref[r:r + 1, 0:width]

    bqkv = vrow(V_BQKV, 3 * E)
    bo = vrow(V_BO, E)
    bf1 = vrow(V_BF1, HID)
    bf2 = vrow(V_BF2, E)
    g1 = vrow(V_G1, E)
    be1 = vrow(V_BE1, E)
    g2 = vrow(V_G2, E)
    be2 = vrow(V_BE2, E)
    wp = vrow(V_WP, E)
    bp = vrow(V_BP, 1)

    # ---- data slab: stacked activations + additive key-padding bias ----
    x_flat = d_ref[0:NB * SEQ, :]                      # (2B*S, E)
    mask_col = d_ref[NB * SEQ:2 * NB * SEQ, 0:1]       # (2B*S, 1)  0 / -1e30

    # fused QKV for all positions of all 2B sequences: one MXU push
    qkv = jnp.dot(x_flat, wqkv, preferred_element_type=jnp.float32) + bqkv   # (2B*S, 3E)
    qkv3 = qkv.reshape(NB, SEQ, 3 * E)
    q0 = qkv3[:, 0, 0:E]                               # (2B, E): only row 0 is consumed
    k = qkv[:, E:2 * E].reshape(NB, SEQ, E)
    v = qkv[:, 2 * E:3 * E]                            # (2B*S, E)

    # per-head scores via constant segment matrix: E stays on the lane dim,
    # no 8-lane head slices / head concatenates.
    prod = q0[:, None, :] * k                          # (2B, S, E)
    scores = jnp.dot(prod.reshape(NB * SEQ, E), seg,
                     preferred_element_type=jnp.float32)       # (2B*S, H), 1/sqrt(Dh) in seg
    scores = scores.reshape(NB, SEQ, H) + mask_col.reshape(NB, SEQ, 1)

    m = jnp.max(scores, axis=1, keepdims=True)         # softmax over keys (sublane dim)
    eexp = jnp.exp(scores - m)
    denom = jnp.sum(eexp, axis=1, keepdims=True)
    probs = eexp * pl.reciprocal(denom, approx=True)   # (2B, S, H)

    # broadcast each head's prob across its Dh lanes, weight V, segment-sum over keys
    p_full = jnp.dot(probs.reshape(NB * SEQ, H), expd,
                     preferred_element_type=jnp.float32)        # (2B*S, E)
    ctx = (p_full * v).reshape(NB, SEQ, E).sum(axis=1)          # (2B, E)
    attn = jnp.dot(ctx, wo, preferred_element_type=jnp.float32) + bo

    x0 = x_flat.reshape(NB, SEQ, E)[:, 0, :]            # (2B, E) residual input (row 0)

    def layer_norm(u, g, b):
        mu = jnp.mean(u, axis=-1, keepdims=True)
        var = jnp.mean((u - mu) ** 2, axis=-1, keepdims=True)
        return (u - mu) * jax.lax.rsqrt(var + LN_EPS) * g + b

    # post-norm TransformerEncoderLayer (ReLU FFN), row 0 only
    src = layer_norm(x0 + attn, g1, be1)
    ff = jnp.maximum(jnp.dot(src, w1, preferred_element_type=jnp.float32) + bf1, 0.0)
    ff = jnp.dot(ff, w2, preferred_element_type=jnp.float32) + bf2
    src = layer_norm(src + ff, g2, be2)                 # (2B, E)

    lr = 0.5 * (src[0:B, :] + src[B:NB, :])             # (B, E) = (L + R) / 2

    # projection head: lane reduction instead of an N=1 MXU matmul
    out_ref[...] = jnp.sum(lr * wp, axis=-1, keepdims=True) + bp


# ------------------------------------ wrapper ----------------------------------------
def make_pe_table(d_model, max_len=5000):
    position = jnp.arange(max_len, dtype=jnp.float32)[:, None]
    div_term = jnp.exp(jnp.arange(0, d_model, 2, dtype=jnp.float32)
                       * (-math.log(10000.0) / d_model))
    pe = jnp.zeros((max_len, d_model), dtype=jnp.float32)
    pe = pe.at[:, 0::2].set(jnp.sin(position * div_term))
    pe = pe.at[:, 1::2].set(jnp.cos(position * div_term))
    return pe


def init_params(key):
    ks = jax.random.split(key, 8)
    p = {}
    p["emb"] = 0.1 * jax.random.normal(ks[0], (VOCAB, D_MODEL), jnp.float32)
    p["pe"] = make_pe_table(D_MODEL)
    # projections stored pre-transposed: y = x @ W + b
    p["wq"] = 0.1 * jax.random.normal(ks[1], (D_MODEL, D_MODEL), jnp.float32)
    p["wk"] = 0.1 * jax.random.normal(ks[2], (D_MODEL, D_MODEL), jnp.float32)
    p["wv"] = 0.1 * jax.random.normal(ks[3], (D_MODEL, D_MODEL), jnp.float32)
    p["wo"] = 0.1 * jax.random.normal(ks[4], (D_MODEL, D_MODEL), jnp.float32)
    p["bq"] = jnp.zeros((1, D_MODEL), jnp.float32)
    p["bk"] = jnp.zeros((1, D_MODEL), jnp.float32)
    p["bv"] = jnp.zeros((1, D_MODEL), jnp.float32)
    p["bo"] = jnp.zeros((1, D_MODEL), jnp.float32)
    p["g1"] = jnp.ones((1, D_MODEL), jnp.float32)
    p["be1"] = jnp.zeros((1, D_MODEL), jnp.float32)
    p["g2"] = jnp.ones((1, D_MODEL), jnp.float32)
    p["be2"] = jnp.zeros((1, D_MODEL), jnp.float32)
    p["w1"] = 0.1 * jax.random.normal(ks[5], (D_MODEL, HIDDEN), jnp.float32)
    p["bf1"] = jnp.zeros((1, HIDDEN), jnp.float32)
    p["w2"] = 0.1 * jax.random.normal(ks[6], (HIDDEN, D_MODEL), jnp.float32)
    p["bf2"] = jnp.zeros((1, D_MODEL), jnp.float32)
    p["wp"] = 0.1 * jax.random.normal(ks[7], (D_MODEL, 1), jnp.float32)
    p["bp"] = jnp.zeros((1, 1), jnp.float32)
    return p


def pack_params(p):
    """Pack all encoder/head parameters into one (P_ROWS, 128) f32 slab -> 1 DMA."""
    Dh = D_MODEL // N_HEAD
    P = jnp.zeros((P_ROWS, P_COLS), jnp.float32)
    wqkv = jnp.concatenate([p["wq"], p["wk"], p["wv"]], axis=1)      # (E, 3E)
    bqkv = jnp.concatenate([p["bq"], p["bk"], p["bv"]], axis=1)      # (1, 3E)
    e_ids = jnp.arange(D_MODEL)[:, None] // Dh                       # (E, 1)
    h_ids = jnp.arange(N_HEAD)[None, :]                              # (1, H)
    onehot = (e_ids == h_ids).astype(jnp.float32)                    # (E, H)
    seg = onehot * (1.0 / math.sqrt(Dh))                             # score reducer
    expd = onehot.T                                                  # (H, E) prob expander

    P = P.at[ROW_WQKV:ROW_WQKV + D_MODEL, 0:3 * D_MODEL].set(wqkv)
    P = P.at[ROW_WO:ROW_WO + D_MODEL, 0:D_MODEL].set(p["wo"])
    P = P.at[ROW_W1:ROW_W1 + D_MODEL, 0:HIDDEN].set(p["w1"])
    P = P.at[ROW_W2:ROW_W2 + HIDDEN, 0:D_MODEL].set(p["w2"])
    P = P.at[ROW_SEG:ROW_SEG + D_MODEL, 0:N_HEAD].set(seg)
    P = P.at[ROW_EXP:ROW_EXP + N_HEAD, 0:D_MODEL].set(expd)

    def setv(P, idx, v):
        return P.at[ROW_VEC + idx:ROW_VEC + idx + 1, 0:v.shape[1]].set(v)

    P = setv(P, V_BQKV, bqkv)
    P = setv(P, V_BO, p["bo"])
    P = setv(P, V_BF1, p["bf1"])
    P = setv(P, V_BF2, p["bf2"])
    P = setv(P, V_G1, p["g1"])
    P = setv(P, V_BE1, p["be1"])
    P = setv(P, V_G2, p["g2"])
    P = setv(P, V_BE2, p["be2"])
    P = setv(P, V_WP, p["wp"].T)
    P = setv(P, V_BP, p["bp"])
    return P


@jax.jit
def attn_model_forward(packed, emb, pe, ids_L, mask_L, ids_R, mask_R):
    b, s = ids_L.shape
    nb = 2 * b

    # TODO(synk): embedding gather + positional-encoding add stay in this tiny XLA
    # prologue (data-dependent gather; not worth an in-kernel DMA gather at this size).
    def embed_pe(ids):
        x = jnp.take(emb, ids, axis=0)                 # (B, S, E)
        # reproduce the PyTorch quirk: PE is applied to a (B,S,E) tensor, so pe[:B]
        # indexes the *batch* dimension and broadcasts over the sequence.
        return (x + pe[:b][:, None, :]).astype(jnp.float32)

    x = jnp.concatenate([embed_pe(ids_L), embed_pe(ids_R)], axis=0)  # (2B, S, E)
    x_flat = x.reshape(nb * s, D_MODEL)
    maskcat = jnp.concatenate([mask_L, mask_R], axis=0)              # True = attend
    bias = jnp.where(maskcat, 0.0, -1e30).astype(jnp.float32).reshape(nb * s, 1)
    data = jnp.concatenate(
        [x_flat, jnp.pad(bias, ((0, 0), (0, D_MODEL - 1)))], axis=0)  # (2*2B*S, E)

    out = pl.pallas_call(
        attn_model_kernel,
        out_shape=jax.ShapeDtypeStruct((b, 1), jnp.float32),
        grid=(1,),
        in_specs=[pl.BlockSpec(data.shape, lambda i: (0, 0)),
                  pl.BlockSpec(packed.shape, lambda i: (0, 0))],
        out_specs=pl.BlockSpec((b, 1), lambda i: (0, 0)),
        compiler_params=pltpu.CompilerParams(
            dimension_semantics=("arbitrary",)),
    )(data, packed)
    return out.reshape(-1)                              # matches out.view(-1)


# -------------------------------------- main -----------------------------------------
if __name__ == "__main__":
    key = jax.random.PRNGKey(0)
    pkey, ikey_l, ikey_r = jax.random.split(key, 3)
    params = init_params(pkey)
    packed = pack_params(params)

    input_ids_L = jax.random.randint(ikey_l, (B, S), 0, VOCAB, dtype=jnp.int32)
    input_ids_R = jax.random.randint(ikey_r, (B, S), 0, VOCAB, dtype=jnp.int32)
    # valid (non-padding) positions
    attn_mask_L = jnp.array([[1, 1, 1, 1, 1, 1, 0, 0],
                             [1, 1, 1, 1, 1, 0, 0, 0]], dtype=jnp.bool_)
    attn_mask_R = jnp.array([[1, 1, 1, 1, 1, 1, 1, 0],
                             [1, 1, 1, 1, 0, 0, 0, 0]], dtype=jnp.bool_)

    out = attn_model_forward(packed, params["emb"], params["pe"],
                             input_ids_L, attn_mask_L, input_ids_R, attn_mask_R)
    out = jax.block_until_ready(out)
    assert out.shape == (B,) and out.dtype == jnp.float32
    assert bool(jnp.all(jnp.isfinite(out)))
    print("KERNEL_OK")
</pallas_src>

<mosaic_0001>
module attributes {stable_mosaic.version = 11 : i64} {
  func.func @attn_model_kernel(%arg0: i32, %arg1: memref<64x32xf32, #tpu.memory_space<vmem>>, %arg2: memref<216x128xf32, #tpu.memory_space<vmem>>, %arg3: memref<2x1xf32, #tpu.memory_space<vmem>>) attributes {dimension_semantics = [#tpu.dimension_semantics<arbitrary>], iteration_bounds = array<i64: 1>, scalar_prefetch = 0 : i64, scratch_operands = 0 : i64, tpu.core_type = #tpu.core_type<tc>, window_params = [{pipeline_mode = #tpu.pipeline_mode<synchronous>, transform_indices = @transform_0, window_bounds = array<i64: 64, 32>}, {pipeline_mode = #tpu.pipeline_mode<synchronous>, transform_indices = @transform_1, window_bounds = array<i64: 216, 128>}, {pipeline_mode = #tpu.pipeline_mode<synchronous>, transform_indices = @transform_2, window_bounds = array<i64: 2, 1>}]} {
    %c0 = arith.constant 0 : index
    %c0_0 = arith.constant 0 : index
    %0 = vector.load %arg2[%c0, %c0_0] : memref<216x128xf32, #tpu.memory_space<vmem>>, vector<32x96xf32>
    %c32 = arith.constant 32 : index
    %c0_1 = arith.constant 0 : index
    %1 = vector.load %arg2[%c32, %c0_1] : memref<216x128xf32, #tpu.memory_space<vmem>>, vector<32x32xf32>
    %c64 = arith.constant 64 : index
    %c0_2 = arith.constant 0 : index
    %2 = vector.load %arg2[%c64, %c0_2] : memref<216x128xf32, #tpu.memory_space<vmem>>, vector<32x64xf32>
    %c96 = arith.constant 96 : index
    %c0_3 = arith.constant 0 : index
    %3 = vector.load %arg2[%c96, %c0_3] : memref<216x128xf32, #tpu.memory_space<vmem>>, vector<64x32xf32>
    %c160 = arith.constant 160 : index
    %c0_4 = arith.constant 0 : index
    %4 = vector.load %arg2[%c160, %c0_4] : memref<216x128xf32, #tpu.memory_space<vmem>>, vector<32x4xf32>
    %c192 = arith.constant 192 : index
    %c0_5 = arith.constant 0 : index
    %5 = vector.load %arg2[%c192, %c0_5] : memref<216x128xf32, #tpu.memory_space<vmem>>, vector<4x32xf32>
    %c200 = arith.constant 200 : index
    %c0_6 = arith.constant 0 : index
    %6 = vector.load %arg2[%c200, %c0_6] : memref<216x128xf32, #tpu.memory_space<vmem>>, vector<1x96xf32>
    %c201 = arith.constant 201 : index
    %c0_7 = arith.constant 0 : index
    %7 = vector.load %arg2[%c201, %c0_7] : memref<216x128xf32, #tpu.memory_space<vmem>>, vector<1x32xf32>
    %c202 = arith.constant 202 : index
    %c0_8 = arith.constant 0 : index
    %8 = vector.load %arg2[%c202, %c0_8] : memref<216x128xf32, #tpu.memory_space<vmem>>, vector<1x64xf32>
    %c203 = arith.constant 203 : index
    %c0_9 = arith.constant 0 : index
    %9 = vector.load %arg2[%c203, %c0_9] : memref<216x128xf32, #tpu.memory_space<vmem>>, vector<1x32xf32>
    %c204 = arith.constant 204 : index
    %c0_10 = arith.constant 0 : index
    %10 = vector.load %arg2[%c204, %c0_10] : memref<216x128xf32, #tpu.memory_space<vmem>>, vector<1x32xf32>
    %c205 = arith.constant 205 : index
    %c0_11 = arith.constant 0 : index
    %11 = vector.load %arg2[%c205, %c0_11] : memref<216x128xf32, #tpu.memory_space<vmem>>, vector<1x32xf32>
    %c206 = arith.constant 206 : index
    %c0_12 = arith.constant 0 : index
    %12 = vector.load %arg2[%c206, %c0_12] : memref<216x128xf32, #tpu.memory_space<vmem>>, vector<1x32xf32>
    %c207 = arith.constant 207 : index
    %c0_13 = arith.constant 0 : index
    %13 = vector.load %arg2[%c207, %c0_13] : memref<216x128xf32, #tpu.memory_space<vmem>>, vector<1x32xf32>
    %c208 = arith.constant 208 : index
    %c0_14 = arith.constant 0 : index
    %14 = vector.load %arg2[%c208, %c0_14] : memref<216x128xf32, #tpu.memory_space<vmem>>, vector<1x32xf32>
    %c209 = arith.constant 209 : index
    %c0_15 = arith.constant 0 : index
    %15 = vector.load %arg2[%c209, %c0_15] : memref<216x128xf32, #tpu.memory_space<vmem>>, vector<1x1xf32>
    %c0_16 = arith.constant 0 : index
    %c0_17 = arith.constant 0 : index
    %16 = vector.load %arg1[%c0_16, %c0_17] : memref<64x32xf32, #tpu.memory_space<vmem>>, vector<32x32xf32>
    %c32_18 = arith.constant 32 : index
    %c0_19 = arith.constant 0 : index
    %17 = vector.load %arg1[%c32_18, %c0_19] : memref<64x32xf32, #tpu.memory_space<vmem>>, vector<32x1xf32>
    %cst = arith.constant dense<0.000000e+00> : vector<32x96xf32>
    %18 = tpu.matmul %16, %0, %cst {dimension_numbers = #tpu.dot_dimension_numbers<[1], [0], [0], [1], [0, 0, 1, 1], [], []>} : vector<32x32xf32>, vector<32x96xf32>, vector<32x96xf32> -> vector<32x96xf32>
    %19 = vector.broadcast %6 : vector<1x96xf32> to vector<32x96xf32>
    %20 = arith.addf %18, %19 : vector<32x96xf32>
    %21 = vector.shape_cast %20 : vector<32x96xf32> to vector<4x8x96xf32>
    %22 = vector.extract_strided_slice %21 {offsets = [0, 0, 0], sizes = [4, 1, 32], strides = [1, 1, 1]} : vector<4x8x96xf32> to vector<4x1x32xf32>
    %23 = vector.shape_cast %22 : vector<4x1x32xf32> to vector<4x32xf32>
    %24 = vector.extract_strided_slice %20 {offsets = [0, 32], sizes = [32, 32], strides = [1, 1]} : vector<32x96xf32> to vector<32x32xf32>
    %25 = vector.shape_cast %24 : vector<32x32xf32> to vector<4x8x32xf32>
    %26 = vector.extract_strided_slice %20 {offsets = [0, 64], sizes = [32, 32], strides = [1, 1]} : vector<32x96xf32> to vector<32x32xf32>
    %27 = vector.shape_cast %23 : vector<4x32xf32> to vector<4x1x32xf32>
    %28 = vector.broadcast %27 : vector<4x1x32xf32> to vector<4x8x32xf32>
    %29 = arith.mulf %28, %25 : vector<4x8x32xf32>
    %30 = vector.shape_cast %29 : vector<4x8x32xf32> to vector<32x32xf32>
    %cst_20 = arith.constant dense<0.000000e+00> : vector<32x4xf32>
    %31 = tpu.matmul %30, %4, %cst_20 {dimension_numbers = #tpu.dot_dimension_numbers<[1], [0], [0], [1], [0, 0, 1, 1], [], []>} : vector<32x32xf32>, vector<32x4xf32>, vector<32x4xf32> -> vector<32x4xf32>
    %32 = vector.shape_cast %31 : vector<32x4xf32> to vector<4x8x4xf32>
    %33 = vector.shape_cast %17 : vector<32x1xf32> to vector<4x8x1xf32>
    %34 = vector.broadcast %33 : vector<4x8x1xf32> to vector<4x8x4xf32>
    %35 = arith.addf %32, %34 : vector<4x8x4xf32>
    %cst_21 = arith.constant dense<0xFF800000> : vector<4x4xf32>
    %36 = vector.multi_reduction <maximumf>, %35, %cst_21 [1] : vector<4x8x4xf32> to vector<4x4xf32>
    %37 = vector.shape_cast %36 : vector<4x4xf32> to vector<4x1x4xf32>
    %38 = vector.broadcast %37 : vector<4x1x4xf32> to vector<4x8x4xf32>
    %39 = arith.subf %35, %38 : vector<4x8x4xf32>
    %40 = math.exp %39 : vector<4x8x4xf32>
    %cst_22 = arith.constant dense<0.000000e+00> : vector<4x4xf32>
    %41 = vector.multi_reduction <add>, %40, %cst_22 [1] : vector<4x8x4xf32> to vector<4x4xf32>
    %42 = vector.shape_cast %41 : vector<4x4xf32> to vector<4x1x4xf32>
    %43 = tpu.reciprocal %42 {approx = true} : vector<4x1x4xf32> -> vector<4x1x4xf32>
    %44 = vector.broadcast %43 : vector<4x1x4xf32> to vector<4x8x4xf32>
    %45 = arith.mulf %40, %44 : vector<4x8x4xf32>
    %46 = vector.shape_cast %45 : vector<4x8x4xf32> to vector<32x4xf32>
    %cst_23 = arith.constant dense<0.000000e+00> : vector<32x32xf32>
    %47 = tpu.matmul %46, %5, %cst_23 {dimension_numbers = #tpu.dot_dimension_numbers<[1], [0], [0], [1], [0, 0, 1, 1], [], []>} : vector<32x4xf32>, vector<4x32xf32>, vector<32x32xf32> -> vector<32x32xf32>
    %48 = arith.mulf %47, %26 : vector<32x32xf32>
    %49 = vector.shape_cast %48 : vector<32x32xf32> to vector<4x8x32xf32>
    %cst_24 = arith.constant dense<0.000000e+00> : vector<4x32xf32>
    %50 = vector.multi_reduction <add>, %49, %cst_24 [1] : vector<4x8x32xf32> to vector<4x32xf32>
    %cst_25 = arith.constant dense<0.000000e+00> : vector<4x32xf32>
    %51 = tpu.matmul %50, %1, %cst_25 {dimension_numbers = #tpu.dot_dimension_numbers<[1], [0], [0], [1], [0, 0, 1, 1], [], []>} : vector<4x32xf32>, vector<32x32xf32>, vector<4x32xf32> -> vector<4x32xf32>
    %52 = vector.broadcast %7 : vector<1x32xf32> to vector<4x32xf32>
    %53 = arith.addf %51, %52 : vector<4x32xf32>
    %54 = vector.shape_cast %16 : vector<32x32xf32> to vector<4x8x32xf32>
    %55 = vector.extract_strided_slice %54 {offsets = [0, 0, 0], sizes = [4, 1, 32], strides = [1, 1, 1]} : vector<4x8x32xf32> to vector<4x1x32xf32>
    %56 = vector.shape_cast %55 : vector<4x1x32xf32> to vector<4x32xf32>
    %57 = arith.addf %56, %53 : vector<4x32xf32>
    %cst_26 = arith.constant dense<0.000000e+00> : vector<4xf32>
    %58 = vector.multi_reduction <add>, %57, %cst_26 [1] : vector<4x32xf32> to vector<4xf32>
    %59 = vector.shape_cast %58 : vector<4xf32> to vector<4x1xf32>
    %cst_27 = arith.constant 3.200000e+01 : f32
    %60 = vector.broadcast %cst_27 : f32 to vector<4x1xf32>
    %61 = arith.divf %59, %60 : vector<4x1xf32>
    %62 = vector.broadcast %61 : vector<4x1xf32> to vector<4x32xf32>
    %63 = arith.subf %57, %62 : vector<4x32xf32>
    %64 = arith.mulf %63, %63 : vector<4x32xf32>
    %cst_28 = arith.constant dense<0.000000e+00> : vector<4xf32>
    %65 = vector.multi_reduction <add>, %64, %cst_28 [1] : vector<4x32xf32> to vector<4xf32>
    %66 = vector.shape_cast %65 : vector<4xf32> to vector<4x1xf32>
    %cst_29 = arith.constant 3.200000e+01 : f32
    %67 = vector.broadcast %cst_29 : f32 to vector<4x1xf32>
    %68 = arith.divf %66, %67 : vector<4x1xf32>
    %69 = vector.broadcast %61 : vector<4x1xf32> to vector<4x32xf32>
    %70 = arith.subf %57, %69 : vector<4x32xf32>
    %cst_30 = arith.constant 9.99999974E-6 : f32
    %71 = vector.broadcast %cst_30 : f32 to vector<4x1xf32>
    %72 = arith.addf %68, %71 : vector<4x1xf32>
    %73 = math.rsqrt %72 : vector<4x1xf32>
    %74 = vector.broadcast %73 : vector<4x1xf32> to vector<4x32xf32>
    %75 = arith.mulf %70, %74 : vector<4x32xf32>
    %76 = vector.broadcast %10 : vector<1x32xf32> to vector<4x32xf32>
    %77 = arith.mulf %75, %76 : vector<4x32xf32>
    %78 = vector.broadcast %11 : vector<1x32xf32> to vector<4x32xf32>
    %79 = arith.addf %77, %78 : vector<4x32xf32>
    %cst_31 = arith.constant dense<0.000000e+00> : vector<4x64xf32>
    %80 = tpu.matmul %79, %2, %cst_31 {dimension_numbers = #tpu.dot_dimension_numbers<[1], [0], [0], [1], [0, 0, 1, 1], [], []>} : vector<4x32xf32>, vector<32x64xf32>, vector<4x64xf32> -> vector<4x64xf32>
    %81 = vector.broadcast %8 : vector<1x64xf32> to vector<4x64xf32>
    %82 = arith.addf %80, %81 : vector<4x64xf32>
    %cst_32 = arith.constant 0.000000e+00 : f32
    %83 = vector.broadcast %cst_32 : f32 to vector<4x64xf32>
    %84 = arith.maximumf %82, %83 : vector<4x64xf32>
    %cst_33 = arith.constant dense<0.000000e+00> : vector<4x32xf32>
    %85 = tpu.matmul %84, %3, %cst_33 {dimension_numbers = #tpu.dot_dimension_numbers<[1], [0], [0], [1], [0, 0, 1, 1], [], []>} : vector<4x64xf32>, vector<64x32xf32>, vector<4x32xf32> -> vector<4x32xf32>
    %86 = vector.broadcast %9 : vector<1x32xf32> to vector<4x32xf32>
    %87 = arith.addf %85, %86 : vector<4x32xf32>
    %88 = arith.addf %79, %87 : vector<4x32xf32>
    %cst_34 = arith.constant dense<0.000000e+00> : vector<4xf32>
    %89 = vector.multi_reduction <add>, %88, %cst_34 [1] : vector<4x32xf32> to vector<4xf32>
    %90 = vector.shape_cast %89 : vector<4xf32> to vector<4x1xf32>
    %cst_35 = arith.constant 3.200000e+01 : f32
    %91 = vector.broadcast %cst_35 : f32 to vector<4x1xf32>
    %92 = arith.divf %90, %91 : vector<4x1xf32>
    %93 = vector.broadcast %92 : vector<4x1xf32> to vector<4x32xf32>
    %94 = arith.subf %88, %93 : vector<4x32xf32>
    %95 = arith.mulf %94, %94 : vector<4x32xf32>
    %cst_36 = arith.constant dense<0.000000e+00> : vector<4xf32>
    %96 = vector.multi_reduction <add>, %95, %cst_36 [1] : vector<4x32xf32> to vector<4xf32>
    %97 = vector.shape_cast %96 : vector<4xf32> to vector<4x1xf32>
    %cst_37 = arith.constant 3.200000e+01 : f32
    %98 = vector.broadcast %cst_37 : f32 to vector<4x1xf32>
    %99 = arith.divf %97, %98 : vector<4x1xf32>
    %100 = vector.broadcast %92 : vector<4x1xf32> to vector<4x32xf32>
    %101 = arith.subf %88, %100 : vector<4x32xf32>
    %cst_38 = arith.constant 9.99999974E-6 : f32
    %102 = vector.broadcast %cst_38 : f32 to vector<4x1xf32>
    %103 = arith.addf %99, %102 : vector<4x1xf32>
    %104 = math.rsqrt %103 : vector<4x1xf32>
    %105 = vector.broadcast %104 : vector<4x1xf32> to vector<4x32xf32>
    %106 = arith.mulf %101, %105 : vector<4x32xf32>
    %107 = vector.broadcast %12 : vector<1x32xf32> to vector<4x32xf32>
    %108 = arith.mulf %106, %107 : vector<4x32xf32>
    %109 = vector.broadcast %13 : vector<1x32xf32> to vector<4x32xf32>
    %110 = arith.addf %108, %109 : vector<4x32xf32>
    %111 = vector.extract_strided_slice %110 {offsets = [0, 0], sizes = [2, 32], strides = [1, 1]} : vector<4x32xf32> to vector<2x32xf32>
    %112 = vector.extract_strided_slice %110 {offsets = [2, 0], sizes = [2, 32], strides = [1, 1]} : vector<4x32xf32> to vector<2x32xf32>
    %113 = arith.addf %111, %112 : vector<2x32xf32>
    %cst_39 = arith.constant 5.000000e-01 : f32
    %114 = vector.broadcast %cst_39 : f32 to vector<2x32xf32>
    %115 = arith.mulf %114, %113 : vector<2x32xf32>
    %116 = vector.broadcast %14 : vector<1x32xf32> to vector<2x32xf32>
    %117 = arith.mulf %115, %116 : vector<2x32xf32>
    %cst_40 = arith.constant dense<0.000000e+00> : vector<2xf32>
    %118 = vector.multi_reduction <add>, %117, %cst_40 [1] : vector<2x32xf32> to vector<2xf32>
    %119 = vector.shape_cast %118 : vector<2xf32> to vector<2x1xf32>
    %120 = vector.broadcast %15 : vector<1x1xf32> to vector<2x1xf32>
    %121 = arith.addf %119, %120 : vector<2x1xf32>
    %c0_41 = arith.constant 0 : index
    %c0_42 = arith.constant 0 : index
    %122 = vector.load %arg3[%c0_41, %c0_42] : memref<2x1xf32, #tpu.memory_space<vmem>>, vector<2x1xf32>
    tpu.vector_store %arg3[%c0_41, %c0_42], %121 {strides = array<i32>} : memref<2x1xf32, #tpu.memory_space<vmem>>, vector<2x1xf32>,
    return
  }
  func.func @transform_0(%arg0: i32) -> (i32, i32) {
    %c0_i32 = arith.constant 0 : i32
    %c0_i32_0 = arith.constant 0 : i32
    %c0_i32_1 = arith.constant 0 : i32
    return %c0_i32, %c0_i32_0 : i32, i32
  }
  func.func @transform_1(%arg0: i32) -> (i32, i32) {
    %c0_i32 = arith.constant 0 : i32
    %c0_i32_0 = arith.constant 0 : i32
    %c0_i32_1 = arith.constant 0 : i32
    return %c0_i32, %c0_i32_0 : i32, i32
  }
  func.func @transform_2(%arg0: i32) -> (i32, i32) {
    %c0_i32 = arith.constant 0 : i32
    %c0_i32_0 = arith.constant 0 : i32
    %c0_i32_1 = arith.constant 0 : i32
    return %c0_i32, %c0_i32_0 : i32, i32
  }
}

</mosaic_0001>

<llo_original>
// kernel: attn_model_forward.1
$region0: #{attn_model_forward.1}
  #allocation0 [shape = 'u32[]', space=smem, size = 0x4, offset = 0x4, fixed_abs, tag = 'smem constant byte address 0x4 - core index']
  #allocation1 [shape = 'u32[144,128]{1,0:T(1,128)}', space=vmem, size = 0x12000, scoped, tag = 'internal scratch']
  %s0 = inlined_call_operand.vmem [shape: f32[64,32], index: 0, kind: input, shape index: {}]
  %s1 = inlined_call_operand.vmem [shape: f32[216,128], index: 1, kind: input, shape index: {}]
  %s2 = inlined_call_operand.vmem [shape: f32[2,1], index: 2, kind: output, shape index: {}]
  %s3 = sld [smem:[#allocation0]]
  $region18: #{attn_model_forward.1} parent=0
    _
  %s5 = ssub.s32 1, %s3
  %s6 = scalar_select 0, %s5, %s3
  // Predicated region
  $region2: #{attn_model_forward.1} parent=0 // pred_check
    _
  $region3: #{attn_model_forward.1} parent=0 // pred_check_branch
    %8 = sbr.rel (0) target = $region5
  $region4: #{attn_model_forward.1} parent=0 // pred_region
    _
  $region5: #{attn_model_forward.1} parent=0 // pred_fallthru
    _
  // Predicated region
  $region6: #{attn_model_forward.1} parent=0 // pred_check
    _
  $region7: #{attn_model_forward.1} parent=0 // pred_check_branch
    %10 = sbr.rel (0) target = $region9
  $region8: #{attn_model_forward.1} parent=0 // pred_region
    _
  $region9: #{attn_model_forward.1} parent=0 // pred_fallthru
    _
  %v11 = vld [vmem:[%s1] sm:$0xff]
  %v12 = vld [vmem:[%s1 + $0x8] sm:$0xff]
  %v13 = vld [vmem:[%s1 + $0x10] sm:$0xff]
  %v14 = vld [vmem:[%s1 + $0x18] sm:$0xff]
  %v15 = vld [vmem:[%s1 + $0x20] sm:$0xff]
  %v16 = vld [vmem:[%s1 + $0x28] sm:$0xff]
  %v17 = vld [vmem:[%s1 + $0x30] sm:$0xff]
  %v18 = vld [vmem:[%s1 + $0x38] sm:$0xff]
  %v19 = vld [vmem:[%s1 + $0x40] sm:$0xff]
  %v20 = vld [vmem:[%s1 + $0x48] sm:$0xff]
  %v21 = vld [vmem:[%s1 + $0x50] sm:$0xff]
  %v22 = vld [vmem:[%s1 + $0x58] sm:$0xff]
  %v23 = vld [vmem:[%s1 + $0x60] sm:$0xff]
  %v24 = vld [vmem:[%s1 + $0x68] sm:$0xff]
  %v25 = vld [vmem:[%s1 + $0x70] sm:$0xff]
  %v26 = vld [vmem:[%s1 + $0x78] sm:$0xff]
  %v27 = vld [vmem:[%s1 + $0x80] sm:$0xff]
  %v28 = vld [vmem:[%s1 + $0x88] sm:$0xff]
  %v29 = vld [vmem:[%s1 + $0x90] sm:$0xff]
  %v30 = vld [vmem:[%s1 + $0x98] sm:$0xff]
  %v31 = vld [vmem:[%s1 + $0xa0] sm:$0xff]
  %v32 = vld [vmem:[%s1 + $0xa8] sm:$0xff]
  %v33 = vld [vmem:[%s1 + $0xb0] sm:$0xff]
  %v34 = vld [vmem:[%s1 + $0xb8] sm:$0xff]
  %v35 = vld [vmem:[%s1 + $0xc0] sm:$0xf]
  %v36 = vld [vmem:[%s1 + $0xc8] sm:$0x1]
  %v37 = vld [vmem:[%s1 + $0xc9] sm:$0x1]
  %v38 = vld [vmem:[%s1 + $0xca] sm:$0x1]
  %v39 = vld [vmem:[%s1 + $0xcb] sm:$0x1]
  %v40 = vld [vmem:[%s1 + $0xcc] sm:$0x1]
  %v41 = vld [vmem:[%s1 + $0xcd] sm:$0x1]
  %v42 = vld [vmem:[%s1 + $0xce] sm:$0x1]
  %v43 = vld [vmem:[%s1 + $0xcf] sm:$0x1]
  %v44 = vld [vmem:[%s1 + $0xd0] sm:$0x1]
  %v45 = vld [vmem:[%s1 + $0xd1] sm:$0x1]
  %v46 = vld [vmem:[%s0] sm:$0xff]
  %v47 = vld [vmem:[%s0 + $0x8] sm:$0xff]
  %v48 = vld [vmem:[%s0 + $0x10] sm:$0xff]
  %v49 = vld [vmem:[%s0 + $0x18] sm:$0xff]
  %v50 = vld [vmem:[%s0 + $0x20] sm:$0xff]
  %v51 = vld [vmem:[%s0 + $0x28] sm:$0xff]
  %v52 = vld [vmem:[%s0 + $0x30] sm:$0xff]
  %v53 = vld [vmem:[%s0 + $0x38] sm:$0xff]
  %v54 = vlaneseq
  %v55 = vshrl.u32 %v54, 7
  %v56 = vsub.s32 0, %v55
  %v57 = vrot.slane %v36, %v56
  %vm58 = vcmask 261120
  %v60 = vsel %vm58, %v46, 0
  %v63 = vsel %vm58, %v47, 0
  %v66 = vsel %vm58, %v48, 0
  %v69 = vsel %vm58, %v49, 0
  %71 = vmatprep.subr.mxu0 0.0
  %72 = vmatpush1.msra.mxu0 0.0
  %73 = vmatprep.subr.mxu0 0.0
  %74 = vmatpush1.msra.mxu0 0.0
  %75 = vmatprep.subr.mxu0 0.0
  %76 = vmatpush1.msra.mxu0 0.0
  %77 = vmatprep.subr.mxu0 0.0
  %78 = vmatpush1.msra.mxu0 0.0
  %79 = vmatprep.subr.mxu0 0.0
  %80 = vmatpush1.msra.mxu0 0.0
  %81 = vmatprep.subr.mxu0 0.0
  %82 = vmatpush1.msra.mxu0 0.0
  %83 = vmatprep.subr.mxu0 0.0
  %84 = vmatpush1.msra.mxu0 0.0
  %85 = vmatprep.subr.mxu0 0.0
  %86 = vmatpush1.msra.mxu0 0.0
  %87 = vmatprep.subr.mxu0 0.0
  %88 = vmatpush1.msra.mxu0 0.0
  %89 = vmatprep.subr.mxu0 0.0
  %90 = vmatpush1.msra.mxu0 0.0
  %91 = vmatprep.subr.mxu0 0.0
  %92 = vmatpush1.msra.mxu0 0.0
  %93 = vmatprep.subr.mxu0 0.0
  %94 = vmatpush1.msra.mxu0 0.0
  %95 = vmatprep.subr.mxu0 0.0
  %96 = vmatpush1.msra.mxu0 %v14
  %97 = vmatprep.subr.mxu0 0.0
  %98 = vmatpush1.msra.mxu0 %v13
  %99 = vmatprep.subr.mxu0 0.0
  %100 = vmatpush1.msra.mxu0 %v12
  %101 = vmatprep.subr.mxu0 0.0
  %102 = vmatpush1.msra.mxu0 %v11
  %103 = vmatprep.subr.mxu0 0.0
  %104 = vmatpush2.msra.mxu0 0.0
  %105 = vmatprep.subr.mxu0 0.0
  %106 = vmatpush2.msra.mxu0 0.0
  %107 = vmatprep.subr.mxu0 0.0
  %108 = vmatpush2.msra.mxu0 0.0
  %109 = vmatprep.subr.mxu0 0.0
  %110 = vmatpush2.msra.mxu0 0.0
  %111 = vmatprep.subr.mxu0 0.0
  %112 = vmatpush2.msra.mxu0 0.0
  %113 = vmatprep.subr.mxu0 0.0
  %114 = vmatpush2.msra.mxu0 0.0
  %115 = vmatprep.subr.mxu0 0.0
  %116 = vmatpush2.msra.mxu0 0.0
  %117 = vmatprep.subr.mxu0 0.0
  %118 = vmatpush2.msra.mxu0 0.0
  %119 = vmatprep.subr.mxu0 0.0
  %120 = vmatpush2.msra.mxu0 0.0
  %121 = vmatprep.subr.mxu0 0.0
  %122 = vmatpush2.msra.mxu0 0.0
  %123 = vmatprep.subr.mxu0 0.0
  %124 = vmatpush2.msra.mxu0 0.0
  %125 = vmatprep.subr.mxu0 0.0
  %126 = vmatpush2.msra.mxu0 0.0
  %127 = vmatprep.subr.mxu0 0.0
  %128 = vmatpush2.msra.mxu0 0.0
  %129 = vmatprep.subr.mxu0 0.0
  %130 = vmatpush2.msra.mxu0 0.0
  %131 = vmatprep.subr.mxu0 0.0
  %132 = vmatpush2.msra.mxu0 0.0
  %133 = vmatprep.subr.mxu0 0.0
  %134 = vmatpush2.msra.mxu0 0.0
  %135 = vmatprep.mubr.f32.mxu0 0.0
  %136 = vmatmul.mubr.f32.gmra.mxu0 %v60
  %v137 = vpop.f32.mrf.mxu0
  %v138 = vadd.f32 %v57, %v137
  %v139 = vpop.f32.mrf.mxu0
  %140 = vmatprep.mubr.f32.mxu0 0.0
  %141 = vmatmul.mubr.f32.gmra.mxu0 %v63
  %v142 = vpop.f32.mrf.mxu0
  %v143 = vadd.f32 %v57, %v142
  %v144 = vpop.f32.mrf.mxu0
  %145 = vmatprep.mubr.f32.mxu0 0.0
  %146 = vmatmul.mubr.f32.gmra.mxu0 %v66
  %v147 = vpop.f32.mrf.mxu0
  %v148 = vadd.f32 %v57, %v147
  %v149 = vpop.f32.mrf.mxu0
  %150 = vmatprep.mubr.f32.mxu0 0.0
  %151 = vmatmul.mubr.f32.gmra.mxu0 %v69
  %v152 = vpop.f32.mrf.mxu0
  %v153 = vadd.f32 %v57, %v152
  %v154 = vpop.f32.mrf.mxu0
  %155 = vdwg.mxu0
  %v156 = vlaneseq
  %v157 = vshrl.u32 %v156, 7
  %v158 = vsub.s32 0, %v157
  %v159 = vrot.slane %v138, %v158
  %v160 = vlaneseq
  %v161 = vshrl.u32 %v160, 7
  %v162 = vsub.s32 0, %v161
  %v163 = vrot.slane %v143, %v162
  %v164 = vlaneseq
  %v165 = vshrl.u32 %v164, 7
  %v166 = vsub.s32 0, %v165
  %v167 = vrot.slane %v148, %v166
  %v168 = vlaneseq
  %v169 = vshrl.u32 %v168, 7
  %v170 = vsub.s32 0, %v169
  %v171 = vrot.slane %v153, %v170
  %176 = vrot.lane.b32.xlu0 %v138, 96
  %v177 = vpop.permute.xlu0 %176
  %178 = vrot.lane.b32.xlu0 %v143, 96
  %v179 = vpop.permute.xlu0 %178
  %180 = vrot.lane.b32.xlu0 %v148, 96
  %v181 = vpop.permute.xlu0 %180
  %182 = vrot.lane.b32.xlu0 %v153, 96
  %v183 = vpop.permute.xlu0 %182
  %v188 = vmul.f32 %v159, %v177
  %v189 = vmul.f32 %v163, %v179
  %v190 = vmul.f32 %v167, %v181
  %v191 = vmul.f32 %v171, %v183
  %v193 = vsel %vm58, %v188, 0
  %v196 = vsel %vm58, %v189, 0
  %v199 = vsel %vm58, %v190, 0
  %v202 = vsel %vm58, %v191, 0
  %204 = vmatprep.subr.mxu0 0.0
  %205 = vmatpush1.msra.mxu0 0.0
  %206 = vmatprep.subr.mxu0 0.0
  %207 = vmatpush1.msra.mxu0 0.0
  %208 = vmatprep.subr.mxu0 0.0
  %209 = vmatpush1.msra.mxu0 0.0
  %210 = vmatprep.subr.mxu0 0.0
  %211 = vmatpush1.msra.mxu0 0.0
  %212 = vmatprep.subr.mxu0 0.0
  %213 = vmatpush1.msra.mxu0 0.0
  %214 = vmatprep.subr.mxu0 0.0
  %215 = vmatpush1.msra.mxu0 0.0
  %216 = vmatprep.subr.mxu0 0.0
  %217 = vmatpush1.msra.mxu0 0.0
  %218 = vmatprep.subr.mxu0 0.0
  %219 = vmatpush1.msra.mxu0 0.0
  %220 = vmatprep.subr.mxu0 0.0
  %221 = vmatpush1.msra.mxu0 0.0
  %222 = vmatprep.subr.mxu0 0.0
  %223 = vmatpush1.msra.mxu0 0.0
  %224 = vmatprep.subr.mxu0 0.0
  %225 = vmatpush1.msra.mxu0 0.0
  %226 = vmatprep.subr.mxu0 0.0
  %227 = vmatpush1.msra.mxu0 0.0
  %228 = vmatprep.subr.mxu0 0.0
  %229 = vmatpush1.msra.mxu0 %v34
  %230 = vmatprep.subr.mxu0 0.0
  %231 = vmatpush1.msra.mxu0 %v33
  %232 = vmatprep.subr.mxu0 0.0
  %233 = vmatpush1.msra.mxu0 %v32
  %234 = vmatprep.subr.mxu0 0.0
  %235 = vmatpush1.msra.mxu0 %v31
  %236 = vmatprep.subr.mxu0 0.0
  %237 = vmatpush2.msra.mxu0 0.0
  %238 = vmatprep.subr.mxu0 0.0
  %239 = vmatpush2.msra.mxu0 0.0
  %240 = vmatprep.subr.mxu0 0.0
  %241 = vmatpush2.msra.mxu0 0.0
  %242 = vmatprep.subr.mxu0 0.0
  %243 = vmatpush2.msra.mxu0 0.0
  %244 = vmatprep.subr.mxu0 0.0
  %245 = vmatpush2.msra.mxu0 0.0
  %246 = vmatprep.subr.mxu0 0.0
  %247 = vmatpush2.msra.mxu0 0.0
  %248 = vmatprep.subr.mxu0 0.0
  %249 = vmatpush2.msra.mxu0 0.0
  %250 = vmatprep.subr.mxu0 0.0
  %251 = vmatpush2.msra.mxu0 0.0
  %252 = vmatprep.subr.mxu0 0.0
  %253 = vmatpush2.msra.mxu0 0.0
  %254 = vmatprep.subr.mxu0 0.0
  %255 = vmatpush2.msra.mxu0 0.0
  %256 = vmatprep.subr.mxu0 0.0
  %257 = vmatpush2.msra.mxu0 0.0
  %258 = vmatprep.subr.mxu0 0.0
  %259 = vmatpush2.msra.mxu0 0.0
  %260 = vmatprep.subr.mxu0 0.0
  %261 = vmatpush2.msra.mxu0 0.0
  %262 = vmatprep.subr.mxu0 0.0
  %263 = vmatpush2.msra.mxu0 0.0
  %264 = vmatprep.subr.mxu0 0.0
  %265 = vmatpush2.msra.mxu0 0.0
  %266 = vmatprep.subr.mxu0 0.0
  %267 = vmatpush2.msra.mxu0 0.0
  %268 = vmatprep.mubr.f32.mxu0 0.0
  %269 = vmatmul.mubr.f32.gmra.mxu0 %v193
  %v270 = vpop.f32.mrf.mxu0
  %v271 = vadd.f32 0.0, %v270
  %v272 = vpop.f32.mrf.mxu0
  %273 = vmatprep.mubr.f32.mxu0 0.0
  %274 = vmatmul.mubr.f32.gmra.mxu0 %v196
  %v275 = vpop.f32.mrf.mxu0
  %v276 = vadd.f32 0.0, %v275
  %v277 = vpop.f32.mrf.mxu0
  %278 = vmatprep.mubr.f32.mxu0 0.0
  %279 = vmatmul.mubr.f32.gmra.mxu0 %v199
  %v280 = vpop.f32.mrf.mxu0
  %v281 = vadd.f32 0.0, %v280
  %v282 = vpop.f32.mrf.mxu0
  %283 = vmatprep.mubr.f32.mxu0 0.0
  %284 = vmatmul.mubr.f32.gmra.mxu0 %v202
  %v285 = vpop.f32.mrf.mxu0
  %v286 = vadd.f32 0.0, %v285
  %v287 = vpop.f32.mrf.mxu0
  %288 = vdwg.mxu0
  %290 = vset.pattern.permute.xlu0 0
  %291 = vperm.xlu0 %290, %v50
  %v292 = vpop.permute.xlu0 %291
  %295 = vset.pattern.permute.xlu0 0
  %296 = vperm.xlu0 %295, %v51
  %v297 = vpop.permute.xlu0 %296
  %300 = vset.pattern.permute.xlu0 0
  %301 = vperm.xlu0 %300, %v52
  %v302 = vpop.permute.xlu0 %301
  %305 = vset.pattern.permute.xlu0 0
  %306 = vperm.xlu0 %305, %v53
  %v307 = vpop.permute.xlu0 %306
  %v309 = vadd.f32 %v271, %v292
  %v310 = vadd.f32 %v276, %v297
  %v311 = vadd.f32 %v281, %v302
  %v312 = vadd.f32 %v286, %v307
  %vm313 = vcmask 31744
  %v314 = vsel %vm313, %v309, -inf
  %v315 = vrot.slane %v314, 4
  %v316 = vmax.f32 %v314, %v315
  %v317 = vrot.slane %v316, 2
  %v318 = vmax.f32 %v316, %v317
  %v319 = vrot.slane %v318, 1
  %v320 = vmax.f32 %v318, %v319
  %v321 = vsel %vm313, %v310, -inf
  %v322 = vrot.slane %v321, 4
  %v323 = vmax.f32 %v321, %v322
  %v324 = vrot.slane %v323, 2
  %v325 = vmax.f32 %v323, %v324
  %v326 = vrot.slane %v325, 1
  %v327 = vmax.f32 %v325, %v326
  %v328 = vsel %vm313, %v311, -inf
  %v329 = vrot.slane %v328, 4
  %v330 = vmax.f32 %v328, %v329
  %v331 = vrot.slane %v330, 2
  %v332 = vmax.f32 %v330, %v331
  %v333 = vrot.slane %v332, 1
  %v334 = vmax.f32 %v332, %v333
  %v335 = vsel %vm313, %v312, -inf
  %v336 = vrot.slane %v335, 4
  %v337 = vmax.f32 %v335, %v336
  %v338 = vrot.slane %v337, 2
  %v339 = vmax.f32 %v337, %v338
  %v340 = vrot.slane %v339, 1
  %v341 = vmax.f32 %v339, %v340
  %v342 = vsub.f32 %v309, %v320
  %v343 = vsub.f32 %v310, %v327
  %v344 = vsub.f32 %v311, %v334
  %v345 = vsub.f32 %v312, %v341
  %v346 = vmul.f32 %v342, 1.442695
  %v347 = vpow.pop %v346
  %v348 = vmul.f32 %v343, 1.442695
  %v349 = vpow.pop %v348
  %v350 = vmul.f32 %v344, 1.442695
  %v351 = vpow.pop %v350
  %v352 = vmul.f32 %v345, 1.442695
  %v353 = vpow.pop %v352
  %v354 = vsel %vm313, %v347, 0.0
  %v355 = vrot.slane %v354, 4
  %v356 = vadd.f32 %v354, %v355
  %v357 = vrot.slane %v356, 2
  %v358 = vadd.f32 %v356, %v357
  %v359 = vrot.slane %v358, 1
  %v360 = vadd.f32 %v358, %v359
  %v361 = vsel %vm313, %v349, 0.0
  %v362 = vrot.slane %v361, 4
  %v363 = vadd.f32 %v361, %v362
  %v364 = vrot.slane %v363, 2
  %v365 = vadd.f32 %v363, %v364
  %v366 = vrot.slane %v365, 1
  %v367 = vadd.f32 %v365, %v366
  %v368 = vsel %vm313, %v351, 0.0
  %v369 = vrot.slane %v368, 4
  %v370 = vadd.f32 %v368, %v369
  %v371 = vrot.slane %v370, 2
  %v372 = vadd.f32 %v370, %v371
  %v373 = vrot.slane %v372, 1
  %v374 = vadd.f32 %v372, %v373
  %v375 = vsel %vm313, %v353, 0.0
  %v376 = vrot.slane %v375, 4
  %v377 = vadd.f32 %v375, %v376
  %v378 = vrot.slane %v377, 2
  %v379 = vadd.f32 %v377, %v378
  %v380 = vrot.slane %v379, 1
  %v381 = vadd.f32 %v379, %v380
  %v382 = vrcp.pop %v360
  %v383 = vrcp.pop %v367
  %v384 = vrcp.pop %v374
  %v385 = vrcp.pop %v381
  %v386 = vmul.f32 %v347, %v382
  %v387 = vmul.f32 %v349, %v383
  %v388 = vmul.f32 %v351, %v384
  %v389 = vmul.f32 %v353, %v385
  %v391 = vsel %vm313, %v386, 0
  %v394 = vsel %vm313, %v387, 0
  %v397 = vsel %vm313, %v388, 0
  %v400 = vsel %vm313, %v389, 0
  %vm402 = vcmask 1043456
  %v404 = vsel %vm402, %v35, 0
  %406 = vmatprep.subr.mxu0 0.0
  %407 = vmatpush1.msra.mxu0 0.0
  %408 = vmatprep.subr.mxu0 0.0
  %409 = vmatpush1.msra.mxu0 0.0
  %410 = vmatprep.subr.mxu0 0.0
  %411 = vmatpush1.msra.mxu0 0.0
  %412 = vmatprep.subr.mxu0 0.0
  %413 = vmatpush1.msra.mxu0 0.0
  %414 = vmatprep.subr.mxu0 0.0
  %415 = vmatpush1.msra.mxu0 0.0
  %416 = vmatprep.subr.mxu0 0.0
  %417 = vmatpush1.msra.mxu0 0.0
  %418 = vmatprep.subr.mxu0 0.0
  %419 = vmatpush1.msra.mxu0 0.0
  %420 = vmatprep.subr.mxu0 0.0
  %421 = vmatpush1.msra.mxu0 0.0
  %422 = vmatprep.subr.mxu0 0.0
  %423 = vmatpush1.msra.mxu0 0.0
  %424 = vmatprep.subr.mxu0 0.0
  %425 = vmatpush1.msra.mxu0 0.0
  %426 = vmatprep.subr.mxu0 0.0
  %427 = vmatpush1.msra.mxu0 0.0
  %428 = vmatprep.subr.mxu0 0.0
  %429 = vmatpush1.msra.mxu0 0.0
  %430 = vmatprep.subr.mxu0 0.0
  %431 = vmatpush1.msra.mxu0 0.0
  %432 = vmatprep.subr.mxu0 0.0
  %433 = vmatpush1.msra.mxu0 0.0
  %434 = vmatprep.subr.mxu0 0.0
  %435 = vmatpush1.msra.mxu0 0.0
  %436 = vmatprep.subr.mxu0 0.0
  %437 = vmatpush1.msra.mxu0 %v404
  %438 = vmatprep.subr.mxu0 0.0
  %439 = vmatpush2.msra.mxu0 0.0
  %440 = vmatprep.subr.mxu0 0.0
  %441 = vmatpush2.msra.mxu0 0.0
  %442 = vmatprep.subr.mxu0 0.0
  %443 = vmatpush2.msra.mxu0 0.0
  %444 = vmatprep.subr.mxu0 0.0
  %445 = vmatpush2.msra.mxu0 0.0
  %446 = vmatprep.subr.mxu0 0.0
  %447 = vmatpush2.msra.mxu0 0.0
  %448 = vmatprep.subr.mxu0 0.0
  %449 = vmatpush2.msra.mxu0 0.0
  %450 = vmatprep.subr.mxu0 0.0
  %451 = vmatpush2.msra.mxu0 0.0
  %452 = vmatprep.subr.mxu0 0.0
  %453 = vmatpush2.msra.mxu0 0.0
  %454 = vmatprep.subr.mxu0 0.0
  %455 = vmatpush2.msra.mxu0 0.0
  %456 = vmatprep.subr.mxu0 0.0
  %457 = vmatpush2.msra.mxu0 0.0
  %458 = vmatprep.subr.mxu0 0.0
  %459 = vmatpush2.msra.mxu0 0.0
  %460 = vmatprep.subr.mxu0 0.0
  %461 = vmatpush2.msra.mxu0 0.0
  %462 = vmatprep.subr.mxu0 0.0
  %463 = vmatpush2.msra.mxu0 0.0
  %464 = vmatprep.subr.mxu0 0.0
  %465 = vmatpush2.msra.mxu0 0.0
  %466 = vmatprep.subr.mxu0 0.0
  %467 = vmatpush2.msra.mxu0 0.0
  %468 = vmatprep.subr.mxu0 0.0
  %469 = vmatpush2.msra.mxu0 0.0
  %470 = vmatprep.mubr.f32.mxu0 0.0
  %471 = vmatmul.mubr.f32.gmra.mxu0 %v391
  %v472 = vpop.f32.mrf.mxu0
  %v473 = vadd.f32 0.0, %v472
  %v474 = vpop.f32.mrf.mxu0
  %475 = vmatprep.mubr.f32.mxu0 0.0
  %476 = vmatmul.mubr.f32.gmra.mxu0 %v394
  %v477 = vpop.f32.mrf.mxu0
  %v478 = vadd.f32 0.0, %v477
  %v479 = vpop.f32.mrf.mxu0
  %480 = vmatprep.mubr.f32.mxu0 0.0
  %481 = vmatmul.mubr.f32.gmra.mxu0 %v397
  %v482 = vpop.f32.mrf.mxu0
  %v483 = vadd.f32 0.0, %v482
  %v484 = vpop.f32.mrf.mxu0
  %485 = vmatprep.mubr.f32.mxu0 0.0
  %486 = vmatmul.mubr.f32.gmra.mxu0 %v400
  %v487 = vpop.f32.mrf.mxu0
  %v488 = vadd.f32 0.0, %v487
  %v489 = vpop.f32.mrf.mxu0
  %490 = vdwg.mxu0
  %491 = vrot.lane.b32.xlu0 %v138, 64
  %v492 = vpop.permute.xlu0 %491
  %493 = vrot.lane.b32.xlu0 %v143, 64
  %v494 = vpop.permute.xlu0 %493
  %495 = vrot.lane.b32.xlu0 %v148, 64
  %v496 = vpop.permute.xlu0 %495
  %497 = vrot.lane.b32.xlu0 %v153, 64
  %v498 = vpop.permute.xlu0 %497
  %v503 = vmul.f32 %v473, %v492
  %v504 = vmul.f32 %v478, %v494
  %v505 = vmul.f32 %v483, %v496
  %v506 = vmul.f32 %v488, %v498
  %v507 = vsel %vm58, %v503, 0.0
  %v508 = vrot.slane %v507, 4
  %v509 = vadd.f32 %v507, %v508
  %v510 = vrot.slane %v509, 2
  %v511 = vadd.f32 %v509, %v510
  %v512 = vrot.slane %v511, 1
  %v513 = vadd.f32 %v511, %v512
  %v514 = vsel %vm58, %v504, 0.0
  %v515 = vrot.slane %v514, 4
  %v516 = vadd.f32 %v514, %v515
  %v517 = vrot.slane %v516, 2
  %v518 = vadd.f32 %v516, %v517
  %v519 = vrot.slane %v518, 1
  %v520 = vadd.f32 %v518, %v519
  %v521 = vsel %vm58, %v505, 0.0
  %v522 = vrot.slane %v521, 4
  %v523 = vadd.f32 %v521, %v522
  %v524 = vrot.slane %v523, 2
  %v525 = vadd.f32 %v523, %v524
  %v526 = vrot.slane %v525, 1
  %v527 = vadd.f32 %v525, %v526
  %v528 = vsel %vm58, %v506, 0.0
  %v529 = vrot.slane %v528, 4
  %v530 = vadd.f32 %v528, %v529
  %v531 = vrot.slane %v530, 2
  %v532 = vadd.f32 %v530, %v531
  %v533 = vrot.slane %v532, 1
  %v534 = vadd.f32 %v532, %v533
  %v535 = vlaneseq
  %v536 = vshrl.u32 %v535, 7
  %v537 = vsub.s32 0, %v536
  %v538 = vrot.slane %v37, %v537
  %vm543 = vcmask 1041409
  %v544 = vsel %vm543, %v520, %v513
  %vm545 = vcmask 1042434
  %v546 = vsel %vm545, %v527, %v544
  %vm547 = vcmask 1043459
  %v548 = vsel %vm547, %v534, %v546
  %v549 = vsel %vm58, %v548, 0
  %551 = vmatprep.subr.mxu0 0.0
  %552 = vmatpush1.msra.mxu0 0.0
  %553 = vmatprep.subr.mxu0 0.0
  %554 = vmatpush1.msra.mxu0 0.0
  %555 = vmatprep.subr.mxu0 0.0
  %556 = vmatpush1.msra.mxu0 0.0
  %557 = vmatprep.subr.mxu0 0.0
  %558 = vmatpush1.msra.mxu0 0.0
  %559 = vmatprep.subr.mxu0 0.0
  %560 = vmatpush1.msra.mxu0 0.0
  %561 = vmatprep.subr.mxu0 0.0
  %562 = vmatpush1.msra.mxu0 0.0
  %563 = vmatprep.subr.mxu0 0.0
  %564 = vmatpush1.msra.mxu0 0.0
  %565 = vmatprep.subr.mxu0 0.0
  %566 = vmatpush1.msra.mxu0 0.0
  %567 = vmatprep.subr.mxu0 0.0
  %568 = vmatpush1.msra.mxu0 0.0
  %569 = vmatprep.subr.mxu0 0.0
  %570 = vmatpush1.msra.mxu0 0.0
  %571 = vmatprep.subr.mxu0 0.0
  %572 = vmatpush1.msra.mxu0 0.0
  %573 = vmatprep.subr.mxu0 0.0
  %574 = vmatpush1.msra.mxu0 0.0
  %575 = vmatprep.subr.mxu0 0.0
  %576 = vmatpush1.msra.mxu0 %v18
  %577 = vmatprep.subr.mxu0 0.0
  %578 = vmatpush1.msra.mxu0 %v17
  %579 = vmatprep.subr.mxu0 0.0
  %580 = vmatpush1.msra.mxu0 %v16
  %581 = vmatprep.subr.mxu0 0.0
  %582 = vmatpush1.msra.mxu0 %v15
  %583 = vmatprep.subr.mxu0 0.0
  %584 = vmatpush2.msra.mxu0 0.0
  %585 = vmatprep.subr.mxu0 0.0
  %586 = vmatpush2.msra.mxu0 0.0
  %587 = vmatprep.subr.mxu0 0.0
  %588 = vmatpush2.msra.mxu0 0.0
  %589 = vmatprep.subr.mxu0 0.0
  %590 = vmatpush2.msra.mxu0 0.0
  %591 = vmatprep.subr.mxu0 0.0
  %592 = vmatpush2.msra.mxu0 0.0
  %593 = vmatprep.subr.mxu0 0.0
  %594 = vmatpush2.msra.mxu0 0.0
  %595 = vmatprep.subr.mxu0 0.0
  %596 = vmatpush2.msra.mxu0 0.0
  %597 = vmatprep.subr.mxu0 0.0
  %598 = vmatpush2.msra.mxu0 0.0
  %599 = vmatprep.subr.mxu0 0.0
  %600 = vmatpush2.msra.mxu0 0.0
  %601 = vmatprep.subr.mxu0 0.0
  %602 = vmatpush2.msra.mxu0 0.0
  %603 = vmatprep.subr.mxu0 0.0
  %604 = vmatpush2.msra.mxu0 0.0
  %605 = vmatprep.subr.mxu0 0.0
  %606 = vmatpush2.msra.mxu0 0.0
  %607 = vmatprep.subr.mxu0 0.0
  %608 = vmatpush2.msra.mxu0 0.0
  %609 = vmatprep.subr.mxu0 0.0
  %610 = vmatpush2.msra.mxu0 0.0
  %611 = vmatprep.subr.mxu0 0.0
  %612 = vmatpush2.msra.mxu0 0.0
  %613 = vmatprep.subr.mxu0 0.0
  %614 = vmatpush2.msra.mxu0 0.0
  %615 = vmatprep.mubr.f32.mxu0 0.0
  %616 = vmatmul.mubr.f32.gmra.mxu0 %v549
  %v617 = vpop.f32.mrf.mxu0
  %v618 = vadd.f32 %v538, %v617
  %v619 = vpop.f32.mrf.mxu0
  %620 = vdwg.mxu0
  %v622 = vrot.slane %v618, 1
  %v623 = vrot.slane %v618, 2
  %v624 = vrot.slane %v618, 3
  %v629 = vadd.f32 %v46, %v618
  %v630 = vadd.f32 %v47, %v622
  %v631 = vadd.f32 %v48, %v623
  %v632 = vadd.f32 %v49, %v624
  %v637 = vrot.slane %v630, 7
  %v638 = vsel %vm543, %v637, %v629
  %v639 = vrot.slane %v631, 6
  %v640 = vsel %vm545, %v639, %v638
  %v641 = vrot.slane %v632, 5
  %v642 = vsel %vm547, %v641, %v640
  %vm644 = vcmask 257024
  %v645 = vsel %vm644, %v642, 0.0
  %646 = vadd.xlane.f32.xlu0 %v645
  %v647 = vpop.xlane.xlu0 %646
  %v648 = vrcp.pop 32.0
  %v649 = vmul.f32 %v647, %v648
  %v651 = vrot.slane %v649, 1
  %v652 = vrot.slane %v649, 2
  %v653 = vrot.slane %v649, 3
  %v658 = vsub.f32 %v629, %v649
  %v659 = vsub.f32 %v630, %v651
  %v660 = vsub.f32 %v631, %v652
  %v661 = vsub.f32 %v632, %v653
  %v662 = vmul.f32 %v658, %v658
  %v663 = vmul.f32 %v659, %v659
  %v664 = vmul.f32 %v660, %v660
  %v665 = vmul.f32 %v661, %v661
  %v670 = vrot.slane %v663, 7
  %v671 = vsel %vm543, %v670, %v662
  %v672 = vrot.slane %v664, 6
  %v673 = vsel %vm545, %v672, %v671
  %v674 = vrot.slane %v665, 5
  %v675 = vsel %vm547, %v674, %v673
  %v677 = vsel %vm644, %v675, 0.0
  %678 = vadd.xlane.f32.xlu0 %v677
  %v679 = vpop.xlane.xlu0 %678
  %v680 = vmul.f32 %v679, %v648
  %v681 = vadd.f32 %v680, 1e-05
  %v682 = vrsqrt.pop %v681
  %v684 = vrot.slane %v682, 1
  %v685 = vrot.slane %v682, 2
  %v686 = vrot.slane %v682, 3
  %v691 = vmul.f32 %v658, %v682
  %v692 = vmul.f32 %v659, %v684
  %v693 = vmul.f32 %v660, %v685
  %v694 = vmul.f32 %v661, %v686
  %v695 = vlaneseq
  %v696 = vshrl.u32 %v695, 7
  %v697 = vsub.s32 0, %v696
  %v698 = vrot.slane %v40, %v697
  %v699 = vmul.f32 %v691, %v698
  %v700 = vmul.f32 %v692, %v698
  %v701 = vmul.f32 %v693, %v698
  %v702 = vmul.f32 %v694, %v698
  %v703 = vlaneseq
  %v704 = vshrl.u32 %v703, 7
  %v705 = vsub.s32 0, %v704
  %v706 = vrot.slane %v41, %v705
  %v707 = vadd.f32 %v699, %v706
  %v708 = vadd.f32 %v700, %v706
  %v709 = vadd.f32 %v701, %v706
  %v710 = vadd.f32 %v702, %v706
  %v711 = vlaneseq
  %v712 = vshrl.u32 %v711, 7
  %v713 = vsub.s32 0, %v712
  %v714 = vrot.slane %v38, %v713
  %v719 = vrot.slane %v708, 7
  %v720 = vsel %vm543, %v719, %v707
  %v721 = vrot.slane %v709, 6
  %v722 = vsel %vm545, %v721, %v720
  %v723 = vrot.slane %v710, 5
  %v724 = vsel %vm547, %v723, %v722
  %v725 = vsel %vm58, %v724, 0
  %727 = vmatprep.subr.mxu0 0.0
  %728 = vmatpush1.msra.mxu0 0.0
  %729 = vmatprep.subr.mxu0 0.0
  %730 = vmatpush1.msra.mxu0 0.0
  %731 = vmatprep.subr.mxu0 0.0
  %732 = vmatpush1.msra.mxu0 0.0
  %733 = vmatprep.subr.mxu0 0.0
  %734 = vmatpush1.msra.mxu0 0.0
  %735 = vmatprep.subr.mxu0 0.0
  %736 = vmatpush1.msra.mxu0 0.0
  %737 = vmatprep.subr.mxu0 0.0
  %738 = vmatpush1.msra.mxu0 0.0
  %739 = vmatprep.subr.mxu0 0.0
  %740 = vmatpush1.msra.mxu0 0.0
  %741 = vmatprep.subr.mxu0 0.0
  %742 = vmatpush1.msra.mxu0 0.0
  %743 = vmatprep.subr.mxu0 0.0
  %744 = vmatpush1.msra.mxu0 0.0
  %745 = vmatprep.subr.mxu0 0.0
  %746 = vmatpush1.msra.mxu0 0.0
  %747 = vmatprep.subr.mxu0 0.0
  %748 = vmatpush1.msra.mxu0 0.0
  %749 = vmatprep.subr.mxu0 0.0
  %750 = vmatpush1.msra.mxu0 0.0
  %751 = vmatprep.subr.mxu0 0.0
  %752 = vmatpush1.msra.mxu0 %v22
  %753 = vmatprep.subr.mxu0 0.0
  %754 = vmatpush1.msra.mxu0 %v21
  %755 = vmatprep.subr.mxu0 0.0
  %756 = vmatpush1.msra.mxu0 %v20
  %757 = vmatprep.subr.mxu0 0.0
  %758 = vmatpush1.msra.mxu0 %v19
  %759 = vmatprep.subr.mxu0 0.0
  %760 = vmatpush2.msra.mxu0 0.0
  %761 = vmatprep.subr.mxu0 0.0
  %762 = vmatpush2.msra.mxu0 0.0
  %763 = vmatprep.subr.mxu0 0.0
  %764 = vmatpush2.msra.mxu0 0.0
  %765 = vmatprep.subr.mxu0 0.0
  %766 = vmatpush2.msra.mxu0 0.0
  %767 = vmatprep.subr.mxu0 0.0
  %768 = vmatpush2.msra.mxu0 0.0
  %769 = vmatprep.subr.mxu0 0.0
  %770 = vmatpush2.msra.mxu0 0.0
  %771 = vmatprep.subr.mxu0 0.0
  %772 = vmatpush2.msra.mxu0 0.0
  %773 = vmatprep.subr.mxu0 0.0
  %774 = vmatpush2.msra.mxu0 0.0
  %775 = vmatprep.subr.mxu0 0.0
  %776 = vmatpush2.msra.mxu0 0.0
  %777 = vmatprep.subr.mxu0 0.0
  %778 = vmatpush2.msra.mxu0 0.0
  %779 = vmatprep.subr.mxu0 0.0
  %780 = vmatpush2.msra.mxu0 0.0
  %781 = vmatprep.subr.mxu0 0.0
  %782 = vmatpush2.msra.mxu0 0.0
  %783 = vmatprep.subr.mxu0 0.0
  %784 = vmatpush2.msra.mxu0 0.0
  %785 = vmatprep.subr.mxu0 0.0
  %786 = vmatpush2.msra.mxu0 0.0
  %787 = vmatprep.subr.mxu0 0.0
  %788 = vmatpush2.msra.mxu0 0.0
  %789 = vmatprep.subr.mxu0 0.0
  %790 = vmatpush2.msra.mxu0 0.0
  %791 = vmatprep.mubr.f32.mxu0 0.0
  %792 = vmatmul.mubr.f32.gmra.mxu0 %v725
  %v793 = vpop.f32.mrf.mxu0
  %v794 = vadd.f32 %v714, %v793
  %v795 = vpop.f32.mrf.mxu0
  %796 = vdwg.mxu0
  %v797 = vmax.f32 %v794, 0.0
  %v798 = vlaneseq
  %v799 = vshrl.u32 %v798, 7
  %v800 = vsub.s32 0, %v799
  %v801 = vrot.slane %v39, %v800
  %vm802 = vcmask 523264
  %v804 = vsel %vm802, %v797, 0
  %806 = vmatprep.subr.mxu0 0.0
  %807 = vmatpush1.msra.mxu0 0.0
  %808 = vmatprep.subr.mxu0 0.0
  %809 = vmatpush1.msra.mxu0 0.0
  %810 = vmatprep.subr.mxu0 0.0
  %811 = vmatpush1.msra.mxu0 0.0
  %812 = vmatprep.subr.mxu0 0.0
  %813 = vmatpush1.msra.mxu0 0.0
  %814 = vmatprep.subr.mxu0 0.0
  %815 = vmatpush1.msra.mxu0 0.0
  %816 = vmatprep.subr.mxu0 0.0
  %817 = vmatpush1.msra.mxu0 0.0
  %818 = vmatprep.subr.mxu0 0.0
  %819 = vmatpush1.msra.mxu0 0.0
  %820 = vmatprep.subr.mxu0 0.0
  %821 = vmatpush1.msra.mxu0 0.0
  %822 = vmatprep.subr.mxu0 0.0
  %823 = vmatpush1.msra.mxu0 %v30
  %824 = vmatprep.subr.mxu0 0.0
  %825 = vmatpush1.msra.mxu0 %v29
  %826 = vmatprep.subr.mxu0 0.0
  %827 = vmatpush1.msra.mxu0 %v28
  %828 = vmatprep.subr.mxu0 0.0
  %829 = vmatpush1.msra.mxu0 %v27
  %830 = vmatprep.subr.mxu0 0.0
  %831 = vmatpush1.msra.mxu0 %v26
  %832 = vmatprep.subr.mxu0 0.0
  %833 = vmatpush1.msra.mxu0 %v25
  %834 = vmatprep.subr.mxu0 0.0
  %835 = vmatpush1.msra.mxu0 %v24
  %836 = vmatprep.subr.mxu0 0.0
  %837 = vmatpush1.msra.mxu0 %v23
  %838 = vmatprep.subr.mxu0 0.0
  %839 = vmatpush2.msra.mxu0 0.0
  %840 = vmatprep.subr.mxu0 0.0
  %841 = vmatpush2.msra.mxu0 0.0
  %842 = vmatprep.subr.mxu0 0.0
  %843 = vmatpush2.msra.mxu0 0.0
  %844 = vmatprep.subr.mxu0 0.0
  %845 = vmatpush2.msra.mxu0 0.0
  %846 = vmatprep.subr.mxu0 0.0
  %847 = vmatpush2.msra.mxu0 0.0
  %848 = vmatprep.subr.mxu0 0.0
  %849 = vmatpush2.msra.mxu0 0.0
  %850 = vmatprep.subr.mxu0 0.0
  %851 = vmatpush2.msra.mxu0 0.0
  %852 = vmatprep.subr.mxu0 0.0
  %853 = vmatpush2.msra.mxu0 0.0
  %854 = vmatprep.subr.mxu0 0.0
  %855 = vmatpush2.msra.mxu0 0.0
  %856 = vmatprep.subr.mxu0 0.0
  %857 = vmatpush2.msra.mxu0 0.0
  %858 = vmatprep.subr.mxu0 0.0
  %859 = vmatpush2.msra.mxu0 0.0
  %860 = vmatprep.subr.mxu0 0.0
  %861 = vmatpush2.msra.mxu0 0.0
  %862 = vmatprep.subr.mxu0 0.0
  %863 = vmatpush2.msra.mxu0 0.0
  %864 = vmatprep.subr.mxu0 0.0
  %865 = vmatpush2.msra.mxu0 0.0
  %866 = vmatprep.subr.mxu0 0.0
  %867 = vmatpush2.msra.mxu0 0.0
  %868 = vmatprep.subr.mxu0 0.0
  %869 = vmatpush2.msra.mxu0 0.0
  %870 = vmatprep.mubr.f32.mxu0 0.0
  %871 = vmatmul.mubr.f32.gmra.mxu0 %v804
  %v872 = vpop.f32.mrf.mxu0
  %v873 = vadd.f32 %v801, %v872
  %v874 = vpop.f32.mrf.mxu0
  %875 = vdwg.mxu0
  %v877 = vrot.slane %v873, 1
  %v878 = vrot.slane %v873, 2
  %v879 = vrot.slane %v873, 3
  %v884 = vadd.f32 %v707, %v873
  %v885 = vadd.f32 %v708, %v877
  %v886 = vadd.f32 %v709, %v878
  %v887 = vadd.f32 %v710, %v879
  %v892 = vrot.slane %v885, 7
  %v893 = vsel %vm543, %v892, %v884
  %v894 = vrot.slane %v886, 6
  %v895 = vsel %vm545, %v894, %v893
  %v896 = vrot.slane %v887, 5
  %v897 = vsel %vm547, %v896, %v895
  %v899 = vsel %vm644, %v897, 0.0
  %900 = vadd.xlane.f32.xlu0 %v899
  %v901 = vpop.xlane.xlu0 %900
  %v902 = vmul.f32 %v901, %v648
  %v904 = vrot.slane %v902, 1
  %v905 = vrot.slane %v902, 2
  %v906 = vrot.slane %v902, 3
  %v911 = vsub.f32 %v884, %v902
  %v912 = vsub.f32 %v885, %v904
  %v913 = vsub.f32 %v886, %v905
  %v914 = vsub.f32 %v887, %v906
  %v915 = vmul.f32 %v911, %v911
  %v916 = vmul.f32 %v912, %v912
  %v917 = vmul.f32 %v913, %v913
  %v918 = vmul.f32 %v914, %v914
  %v923 = vrot.slane %v916, 7
  %v924 = vsel %vm543, %v923, %v915
  %v925 = vrot.slane %v917, 6
  %v926 = vsel %vm545, %v925, %v924
  %v927 = vrot.slane %v918, 5
  %v928 = vsel %vm547, %v927, %v926
  %v930 = vsel %vm644, %v928, 0.0
  %931 = vadd.xlane.f32.xlu0 %v930
  %v932 = vpop.xlane.xlu0 %931
  %v933 = vmul.f32 %v932, %v648
  %v934 = vadd.f32 %v933, 1e-05
  %v935 = vrsqrt.pop %v934
  %v937 = vrot.slane %v935, 1
  %v938 = vrot.slane %v935, 2
  %v939 = vrot.slane %v935, 3
  %v944 = vmul.f32 %v911, %v935
  %v945 = vmul.f32 %v912, %v937
  %v946 = vmul.f32 %v913, %v938
  %v947 = vmul.f32 %v914, %v939
  %v948 = vlaneseq
  %v949 = vshrl.u32 %v948, 7
  %v950 = vsub.s32 0, %v949
  %v951 = vrot.slane %v42, %v950
  %v952 = vmul.f32 %v944, %v951
  %v953 = vmul.f32 %v945, %v951
  %v954 = vmul.f32 %v946, %v951
  %v955 = vmul.f32 %v947, %v951
  %v956 = vlaneseq
  %v957 = vshrl.u32 %v956, 7
  %v958 = vsub.s32 0, %v957
  %v959 = vrot.slane %v43, %v958
  %v960 = vadd.f32 %v952, %v959
  %v961 = vadd.f32 %v953, %v959
  %v962 = vadd.f32 %v954, %v959
  %v963 = vadd.f32 %v955, %v959
  %v964 = vadd.f32 %v960, %v962
  %v965 = vadd.f32 %v961, %v963
  %v966 = vmul.f32 %v964, 0.5
  %v967 = vmul.f32 %v965, 0.5
  %v968 = vlaneseq
  %v969 = vshrl.u32 %v968, 7
  %v970 = vsub.s32 0, %v969
  %v971 = vrot.slane %v44, %v970
  %v972 = vmul.f32 %v966, %v971
  %v973 = vmul.f32 %v967, %v971
  %v976 = vrot.slane %v973, 7
  %v977 = vsel %vm543, %v976, %v972
  %vm979 = vcmask 254976
  %v980 = vsel %vm979, %v977, 0.0
  %981 = vadd.xlane.f32.xlu0 %v980
  %v982 = vpop.xlane.xlu0 %981
  %v983 = vlaneseq
  %v984 = vshrl.u32 %v983, 7
  %v985 = vsub.s32 0, %v984
  %v986 = vrot.slane %v45, %v985
  %v987 = vadd.f32 %v982, %v986
  %vm988 = vcmask 1024
  %989 = vst.msk [vmem:[%s2] sm:$0x3] %vm988, %v987
  // Predicated region
  $region10: #{attn_model_forward.1} parent=0 // pred_check
    _
  $region11: #{attn_model_forward.1} parent=0 // pred_check_branch
    %991 = sbr.rel (0) target = $region13
  $region12: #{attn_model_forward.1} parent=0 // pred_region
    _
  $region13: #{attn_model_forward.1} parent=0 // pred_fallthru
    _
  // Predicated region
  $region14: #{attn_model_forward.1} parent=0 // pred_check
    _
  $region15: #{attn_model_forward.1} parent=0 // pred_check_branch
    %993 = sbr.rel (0) target = $region17
  $region16: #{attn_model_forward.1} parent=0 // pred_region
    _
  $region17: #{attn_model_forward.1} parent=0 // pred_fallthru
    _

</llo_original>
